<compile_context>
chip_gen: v5e
topology: v5e:2x2
jax: 0.10.0
libtpu: 0.0.40
codegen_flags: <defaults>
</compile_context>

<pallas_src>
import functools

import jax
import jax.numpy as jnp
from jax.experimental import pallas as pl
from jax.experimental.pallas import tpu as pltpu


def _motion_loss_kernel(x_ref, out_ref, *, B, TB, T, D):
    """x_ref: (TB, T, D) batch block; out_ref: (1, 2, D) per-block partial sums.

    out_ref[0, 0, :] = sum over (batch-in-block, time) of |central diff| / 2
    out_ref[0, 1, :] = sum over batch-in-block of unbiased variance over time
    """
    xb = x_ref[...]
    xf = xb.astype(jnp.float32)  # single cast AFTER the DMA (bf16 narrow on HBM)

    # ---- central difference -------------------------------------------------
    #   t == 0      -> |x[1]   - x[0]  |
    #   t == T-1    -> |x[T-1] - x[T-2]|
    #   0 < t < T-1 -> |x[t+1] - x[t-1]|  == sum_{i=0..T-3} |x[i+2] - x[i]|
    first = jnp.abs(xf[:, 1, :] - xf[:, 0, :])               # (TB, D)
    last = jnp.abs(xf[:, T - 1, :] - xf[:, T - 2, :])        # (TB, D)
    c_row = first + last                                     # (TB, D)

    if T > 2:
        if T % 8 == 0:
            # Single XLU sublane rotate against the unshifted block.  Summing
            # |roll(x, 2) - x| over ALL T rows equals the interior sum plus the
            # two wrapped pairs {|x0 - x_{T-2}|, |x1 - x_{T-1}|} regardless of
            # the rotation direction, so subtract those (direction-agnostic).
            rolled = pltpu.roll(xf, shift=2, axis=1)
            d_all = jnp.sum(jnp.abs(rolled - xf), axis=1)     # (TB, D)
            wrap = (jnp.abs(xf[:, 0, :] - xf[:, T - 2, :])
                    + jnp.abs(xf[:, 1, :] - xf[:, T - 1, :]))
            c_row = c_row + (d_all - wrap)
        else:
            # Fallback for T not a sublane multiple: one offset slice.
            interior = jnp.abs(xf[:, 2:, :] - xf[:, :-2, :])  # (TB, T-2, D)
            c_row = c_row + jnp.sum(interior, axis=1)

    # ---- unbiased variance over time (torch.var default, ddof=1) ------------
    # Shifted one-pass variance: single traversal, no (TB,T,D) squared-dev
    # temporary; the shift by x[:, 0] avoids cancellation when |mean| >> std.
    y = xf - xf[:, 0:1, :]                                    # (TB, T, D)
    s1 = jnp.sum(y, axis=1)                                   # (TB, D)
    s2 = jnp.sum(y * y, axis=1)                               # (TB, D)
    var_row = (s2 - s1 * s1 * (1.0 / T)) * (1.0 / (T - 1))    # (TB, D)

    # ---- ragged last block: mask the T-reduced rows only (select, no leak) --
    if B % TB != 0:
        b_base = pl.program_id(0) * TB
        row = jax.lax.broadcasted_iota(jnp.int32, (TB, 1), 0)
        valid = (b_base + row) < B                            # (TB, 1)
        c_row = jnp.where(valid, c_row, 0.0)
        var_row = jnp.where(valid, var_row, 0.0)

    # ---- direct lane-dense row writes (no concat/relayout in the epilogue) --
    out_ref[0, 0:1, :] = 0.5 * jnp.sum(c_row, axis=0, keepdims=True)   # (1, D)
    out_ref[0, 1:2, :] = jnp.sum(var_row, axis=0, keepdims=True)       # (1, D)


def motion_loss(x, *, target_f32_block_bytes=2 * 1024 * 1024):
    """loss = 1 / (mean(|central diff|/2) + mean(var(x, dim=1, unbiased)) + 1)."""
    B, T, D = x.shape
    if T < 2:
        raise ValueError("Motion_loss requires T >= 2 (unbiased variance over time).")

    itemsize = jnp.dtype(x.dtype).itemsize

    # Size TB by the in-kernel f32 working set (the kernel holds f32 copies /
    # temporaries regardless of the HBM dtype), not by the HBM itemsize.
    f32_row_bytes = T * D * 4
    TB = int(max(1, min(B, target_f32_block_bytes // f32_row_bytes)))
    # Keep >= 4 blocks when B permits: v7x's two TensorCores both get work and
    # the per-block input DMA stays double-buffered; ~1-2 MiB blocks are still
    # at/near the HBM roofline.
    TB = int(min(TB, max(1, pl.cdiv(B, 4))))
    num_blocks = pl.cdiv(B, TB)

    # Explicit VMEM budget: double-buffered input block + ~4-5 live f32
    # block-sized temporaries, with 2x headroom.  Clamped so it fits every
    # generation (v5e scoped default 16 MiB -> raised explicitly; v7x 64 MiB
    # physical -> never ask for more than 48 MiB).
    block_elems = TB * T * D
    est_vmem = 2 * block_elems * itemsize + 5 * block_elems * 4 + 4 * 2 * D * 4
    vmem_limit = int(min(48 * 1024 * 1024, max(32 * 1024 * 1024, 2 * est_vmem)))

    kernel = functools.partial(_motion_loss_kernel, B=B, TB=TB, T=T, D=D)

    partials = pl.pallas_call(
        kernel,
        out_shape=jax.ShapeDtypeStruct((num_blocks, 2, D), jnp.float32),
        grid_spec=pltpu.PrefetchScalarGridSpec(
            num_scalar_prefetch=0,
            grid=(num_blocks,),
            in_specs=[pl.BlockSpec((TB, T, D), lambda blk: (blk, 0, 0))],
            out_specs=pl.BlockSpec((1, 2, D), lambda blk: (blk, 0, 0)),
        ),
        compiler_params=pltpu.CompilerParams(
            dimension_semantics=("parallel",),   # independent blocks -> 2-TC sharding
            vmem_limit_bytes=vmem_limit,
        ),
        cost_estimate=pl.CostEstimate(
            flops=9 * B * T * D,
            transcendentals=0,
            bytes_accessed=B * T * D * itemsize + num_blocks * 2 * D * 4,
        ),
    )(x)

    # Tiny final reduce in the wrapper (partials are (num_blocks, 2, D)).
    C = jnp.sum(partials[:, 0, :]) / (B * T * D)
    V = jnp.sum(partials[:, 1, :]) / (B * D)
    L = C + V
    return 1.0 / (L + 1.0)


def motion_loss_ref(x):
    """Pure-JAX reference mirroring the PyTorch forward exactly."""
    x = x.astype(jnp.float32)
    sl = jnp.concatenate([x[:, :1], x[:, :-1]], axis=1)
    sr = jnp.concatenate([x[:, 1:], x[:, -1:]], axis=1)
    central_diff = jnp.abs(sr - sl) / 2.0
    C = jnp.mean(jnp.mean(jnp.mean(central_diff, axis=1), axis=1))
    b = jnp.var(x, axis=1, ddof=1)  # torch.var default: unbiased
    V = jnp.mean(jnp.mean(b, axis=1))
    L = C + V
    return 1.0 / (L + 1.0)


if __name__ == "__main__":
    key = jax.random.PRNGKey(0)

    # Main test: x [batch=2, time=8, features=128]; TB clamps to 1 -> 2 blocks.
    x = jax.random.normal(key, (2, 8, 128), dtype=jnp.float32)
    loss = jax.block_until_ready(motion_loss(x))
    ref = motion_loss_ref(x)
    assert jnp.allclose(loss, ref, rtol=2e-5, atol=1e-6), (loss, ref)

    # Ragged / multi-block parallel path: B=5 with forced TB=2 -> 3 blocks,
    # last block masked on the reduced rows in-kernel.
    x2 = jax.random.normal(jax.random.PRNGKey(1), (5, 8, 128), dtype=jnp.float32)
    loss2 = jax.block_until_ready(
        motion_loss(x2, target_f32_block_bytes=2 * 8 * 128 * 4))
    ref2 = motion_loss_ref(x2)
    assert jnp.allclose(loss2, ref2, rtol=2e-5, atol=1e-6), (loss2, ref2)

    # Default sizing path with B divisible by 4: 4 blocks, TB = 4.
    x4 = jax.random.normal(jax.random.PRNGKey(2), (16, 8, 128), dtype=jnp.float32)
    loss4 = jax.block_until_ready(motion_loss(x4))
    ref4 = motion_loss_ref(x4)
    assert jnp.allclose(loss4, ref4, rtol=2e-5, atol=1e-6), (loss4, ref4)

    # bf16 input stays bf16 across HBM; single cast to f32 inside the kernel.
    x3 = x.astype(jnp.bfloat16)
    loss3 = jax.block_until_ready(motion_loss(x3))
    ref3 = motion_loss_ref(x3)
    assert jnp.allclose(loss3, ref3, rtol=1e-4, atol=1e-5), (loss3, ref3)

    print("KERNEL_OK")
</pallas_src>

<mosaic_0001>
module attributes {stable_mosaic.version = 11 : i64} {
  func.func @_motion_loss_kernel(%arg0: i32, %arg1: memref<1x8x128xf32, #tpu.memory_space<vmem>>, %arg2: memref<1x2x128xf32, #tpu.memory_space<vmem>>) attributes {dimension_semantics = [#tpu.dimension_semantics<parallel>], iteration_bounds = array<i64: 2>, scalar_prefetch = 0 : i64, scratch_operands = 0 : i64, tpu.core_type = #tpu.core_type<tc>, window_params = [{transform_indices = @transform_0, window_bounds = array<i64: 1, 8, 128>}, {transform_indices = @transform_1, window_bounds = array<i64: 1, 2, 128>}]} {
    %c0 = arith.constant 0 : index
    %c0_0 = arith.constant 0 : index
    %c0_1 = arith.constant 0 : index
    %0 = vector.load %arg1[%c0, %c0_0, %c0_1] : memref<1x8x128xf32, #tpu.memory_space<vmem>>, vector<1x8x128xf32>
    %1 = vector.extract_strided_slice %0 {offsets = [0, 1, 0], sizes = [1, 1, 128], strides = [1, 1, 1]} : vector<1x8x128xf32> to vector<1x1x128xf32>
    %2 = vector.shape_cast %1 : vector<1x1x128xf32> to vector<1x128xf32>
    %3 = vector.extract_strided_slice %0 {offsets = [0, 0, 0], sizes = [1, 1, 128], strides = [1, 1, 1]} : vector<1x8x128xf32> to vector<1x1x128xf32>
    %4 = vector.shape_cast %3 : vector<1x1x128xf32> to vector<1x128xf32>
    %5 = arith.subf %2, %4 : vector<1x128xf32>
    %6 = math.absf %5 : vector<1x128xf32>
    %7 = vector.extract_strided_slice %0 {offsets = [0, 7, 0], sizes = [1, 1, 128], strides = [1, 1, 1]} : vector<1x8x128xf32> to vector<1x1x128xf32>
    %8 = vector.shape_cast %7 : vector<1x1x128xf32> to vector<1x128xf32>
    %9 = vector.extract_strided_slice %0 {offsets = [0, 6, 0], sizes = [1, 1, 128], strides = [1, 1, 1]} : vector<1x8x128xf32> to vector<1x1x128xf32>
    %10 = vector.shape_cast %9 : vector<1x1x128xf32> to vector<1x128xf32>
    %11 = arith.subf %8, %10 : vector<1x128xf32>
    %12 = math.absf %11 : vector<1x128xf32>
    %13 = arith.addf %6, %12 : vector<1x128xf32>
    %c2_i32 = arith.constant 2 : i32
    %14 = tpu.dynamic_rotate %0 by %c2_i32 dim 1 : vector<1x8x128xf32>, i32 -> vector<1x8x128xf32>
    %15 = arith.subf %14, %0 : vector<1x8x128xf32>
    %16 = math.absf %15 : vector<1x8x128xf32>
    %cst = arith.constant dense<0.000000e+00> : vector<1x128xf32>
    %17 = vector.multi_reduction <add>, %16, %cst [1] : vector<1x8x128xf32> to vector<1x128xf32>
    %18 = vector.extract_strided_slice %0 {offsets = [0, 0, 0], sizes = [1, 1, 128], strides = [1, 1, 1]} : vector<1x8x128xf32> to vector<1x1x128xf32>
    %19 = vector.shape_cast %18 : vector<1x1x128xf32> to vector<1x128xf32>
    %20 = vector.extract_strided_slice %0 {offsets = [0, 6, 0], sizes = [1, 1, 128], strides = [1, 1, 1]} : vector<1x8x128xf32> to vector<1x1x128xf32>
    %21 = vector.shape_cast %20 : vector<1x1x128xf32> to vector<1x128xf32>
    %22 = arith.subf %19, %21 : vector<1x128xf32>
    %23 = math.absf %22 : vector<1x128xf32>
    %24 = vector.extract_strided_slice %0 {offsets = [0, 1, 0], sizes = [1, 1, 128], strides = [1, 1, 1]} : vector<1x8x128xf32> to vector<1x1x128xf32>
    %25 = vector.shape_cast %24 : vector<1x1x128xf32> to vector<1x128xf32>
    %26 = vector.extract_strided_slice %0 {offsets = [0, 7, 0], sizes = [1, 1, 128], strides = [1, 1, 1]} : vector<1x8x128xf32> to vector<1x1x128xf32>
    %27 = vector.shape_cast %26 : vector<1x1x128xf32> to vector<1x128xf32>
    %28 = arith.subf %25, %27 : vector<1x128xf32>
    %29 = math.absf %28 : vector<1x128xf32>
    %30 = arith.addf %23, %29 : vector<1x128xf32>
    %31 = arith.subf %17, %30 : vector<1x128xf32>
    %32 = arith.addf %13, %31 : vector<1x128xf32>
    %33 = vector.extract_strided_slice %0 {offsets = [0, 0, 0], sizes = [1, 1, 128], strides = [1, 1, 1]} : vector<1x8x128xf32> to vector<1x1x128xf32>
    %34 = vector.broadcast %33 : vector<1x1x128xf32> to vector<1x8x128xf32>
    %35 = arith.subf %0, %34 : vector<1x8x128xf32>
    %cst_2 = arith.constant dense<0.000000e+00> : vector<1x128xf32>
    %36 = vector.multi_reduction <add>, %35, %cst_2 [1] : vector<1x8x128xf32> to vector<1x128xf32>
    %37 = arith.mulf %35, %35 : vector<1x8x128xf32>
    %cst_3 = arith.constant dense<0.000000e+00> : vector<1x128xf32>
    %38 = vector.multi_reduction <add>, %37, %cst_3 [1] : vector<1x8x128xf32> to vector<1x128xf32>
    %39 = arith.mulf %36, %36 : vector<1x128xf32>
    %cst_4 = arith.constant 1.250000e-01 : f32
    %40 = vector.broadcast %cst_4 : f32 to vector<1x128xf32>
    %41 = arith.mulf %39, %40 : vector<1x128xf32>
    %42 = arith.subf %38, %41 : vector<1x128xf32>
    %cst_5 = arith.constant 0.142857149 : f32
    %43 = vector.broadcast %cst_5 : f32 to vector<1x128xf32>
    %44 = arith.mulf %42, %43 : vector<1x128xf32>
    %cst_6 = arith.constant dense<0.000000e+00> : vector<128xf32>
    %45 = vector.multi_reduction <add>, %32, %cst_6 [0] : vector<1x128xf32> to vector<128xf32>
    %46 = vector.shape_cast %45 : vector<128xf32> to vector<1x128xf32>
    %cst_7 = arith.constant 5.000000e-01 : f32
    %47 = vector.broadcast %cst_7 : f32 to vector<1x128xf32>
    %48 = arith.mulf %47, %46 : vector<1x128xf32>
    %c0_8 = arith.constant 0 : index
    %c0_9 = arith.constant 0 : index
    %c0_10 = arith.constant 0 : index
    %49 = vector.load %arg2[%c0_8, %c0_9, %c0_10] : memref<1x2x128xf32, #tpu.memory_space<vmem>>, vector<1x1x128xf32>
    %50 = vector.shape_cast %49 : vector<1x1x128xf32> to vector<1x128xf32>
    %51 = vector.shape_cast %48 : vector<1x128xf32> to vector<1x1x128xf32>
    tpu.vector_store %arg2[%c0_8, %c0_9, %c0_10], %51 {strides = array<i32>} : memref<1x2x128xf32, #tpu.memory_space<vmem>>, vector<1x1x128xf32>,
    %cst_11 = arith.constant dense<0.000000e+00> : vector<128xf32>
    %52 = vector.multi_reduction <add>, %44, %cst_11 [0] : vector<1x128xf32> to vector<128xf32>
    %53 = vector.shape_cast %52 : vector<128xf32> to vector<1x128xf32>
    %c0_12 = arith.constant 0 : index
    %c1 = arith.constant 1 : index
    %c0_13 = arith.constant 0 : index
    %54 = vector.load %arg2[%c0_12, %c1, %c0_13] : memref<1x2x128xf32, #tpu.memory_space<vmem>>, vector<1x1x128xf32>
    %55 = vector.shape_cast %54 : vector<1x1x128xf32> to vector<1x128xf32>
    %56 = vector.shape_cast %53 : vector<1x128xf32> to vector<1x1x128xf32>
    tpu.vector_store %arg2[%c0_12, %c1, %c0_13], %56 {strides = array<i32>} : memref<1x2x128xf32, #tpu.memory_space<vmem>>, vector<1x1x128xf32>,
    return
  }
  func.func @transform_0(%arg0: i32) -> (i32, i32, i32) {
    %c0_i32 = arith.constant 0 : i32
    %c0_i32_0 = arith.constant 0 : i32
    %c0_i32_1 = arith.constant 0 : i32
    return %arg0, %c0_i32, %c0_i32_0 : i32, i32, i32
  }
  func.func @transform_1(%arg0: i32) -> (i32, i32, i32) {
    %c0_i32 = arith.constant 0 : i32
    %c0_i32_0 = arith.constant 0 : i32
    %c0_i32_1 = arith.constant 0 : i32
    return %arg0, %c0_i32, %c0_i32_0 : i32, i32, i32
  }
}

</mosaic_0001>

<llo_original>
// kernel: tpu_custom_call.1
$region0: #{tpu_custom_call.1}
  #allocation0 [shape = 'u32[]', space=smem, size = 0x4, offset = 0x4, fixed_abs, tag = 'smem constant byte address 0x4 - core index']
  #allocation1 [shape = 'u32[72,128]{1,0:T(1,128)}', space=vmem, size = 0x9000, scoped, tag = 'internal scratch']
  %s0 = inlined_call_operand.hbm [shape: f32[2,8,128], index: 0, kind: input, shape index: {}]
  %s1 = inlined_call_operand.hbm [shape: f32[2,2,128], index: 1, kind: output, shape index: {}]
  %s2 = sld [smem:[#allocation0]]
  $region41: #{tpu_custom_call.1} parent=0
    _
  %s4 = ssub.s32 1, %s2
  %s5 = scalar_select 0, %s4, %s2
  $region1: #{tpu_custom_call.1} parent=0
    #allocation2 [shape = 'u8[8192]{0}', space=vmem, size = 0x2000, scoped, tag = 'input window, operand 0']
    #allocation3 [shape = 's32[2]{0}', space=sflag, size = 0x8, scoped, tag = 'scoped memory for tpu_custom_call.1']
    #allocation4 [shape = 's32[2]{0}', space=sflag, size = 0x8, scoped, tag = 'scoped memory for tpu_custom_call.1']
    #allocation5 [shape = 'u8[2048]{0}', space=vmem, size = 0x800, scoped, tag = 'output window, operand 0']
    %6 = vsyncpa [#allocation3], 0
    %s7 = scalar_lea.sflag [#allocation3], 1
    %8 = vsyncpa %s7, 0
    %9 = vsyncpa [#allocation4], 0
    %s10 = scalar_lea.sflag [#allocation4], 1
    %11 = vsyncpa %s10, 0
    loop: start=0, step=1, limit=4
    $region2: #{tpu_custom_call.1} parent=1 // loop_pre_header
      _
    $region3: #{tpu_custom_call.1} parent=1 // loop_header
      %s13 = sphi 0, %s17
      %p14 = scmp.ge.s32.totalorder %s13, 4
      %s23 = sphi 0, %s25
      %s26 = sphi 0, %s23
      %s27 = sphi 0, %s26
      %s43 = sphi 0, %s27
      %s49 = sphi 0, %s51
      %s52 = sphi 0, %s49
      %s53 = sphi 0, %s52
      %s69 = sphi 0, %s53
    $region4: #{tpu_custom_call.1} parent=1 // loop_header_branch
      %16 = sbr.rel (%p14) target = $region8
    $region5: #{tpu_custom_call.1} parent=1 // loop_body
      %s18 = ssub.s32 %s13, 1
      %s19 = ssub.s32 %s13, 2
      %s20 = sadd.s32 %s13, 1
      %s21 = ssub.s32 %s13, %s20
      %p22 = scmp.eq.s32.totalorder %s21, 0
      %s24 = sadd.s32 %s23, 1
      %s25 = scalar_select %p22, %s23, %s24
      %p28 = pneg %p22
      %p29 = scmp.eq.s32.totalorder %s13, 1
      %p30 = por %p28, %p29
      %p31 = scmp.ne.s32.totalorder %s23, %s26
      %p32 = scmp.eq.s32.totalorder %s13, 0
      %p33 = por %p31, %p32
      %p34 = scmp.ne.s32.totalorder %s23, %s26
      %p35 = scmp.eq.s32.totalorder %s18, 1
      %p36 = por %p34, %p35
      %p37 = scmp.ne.s32.totalorder %s26, %s27
      %p38 = scmp.eq.s32.totalorder %s18, 0
      %p39 = por %p37, %p38
      %p40 = scmp.ne.s32.totalorder %s26, %s27
      %p41 = scmp.eq.s32.totalorder %s19, 1
      %p42 = por %p40, %p41
      %p44 = scmp.ne.s32.totalorder %s27, %s43
      %p45 = scmp.eq.s32.totalorder %s19, 0
      %p46 = por %p44, %p45
      %s47 = ssub.s32 %s13, %s20
      %p48 = scmp.eq.s32.totalorder %s47, 0
      %s50 = sadd.s32 %s49, 1
      %s51 = scalar_select %p48, %s49, %s50
      %p54 = pneg %p48
      %p55 = scmp.eq.s32.totalorder %s13, 1
      %p56 = por %p54, %p55
      %p57 = scmp.ne.s32.totalorder %s49, %s52
      %p58 = scmp.eq.s32.totalorder %s13, 0
      %p59 = por %p57, %p58
      %p60 = scmp.ne.s32.totalorder %s49, %s52
      %p61 = scmp.eq.s32.totalorder %s18, 1
      %p62 = por %p60, %p61
      %p63 = scmp.ne.s32.totalorder %s52, %s53
      %p64 = scmp.eq.s32.totalorder %s18, 0
      %p65 = por %p63, %p64
      %p66 = scmp.ne.s32.totalorder %s52, %s53
      %p67 = scmp.eq.s32.totalorder %s19, 1
      %p68 = por %p66, %p67
      %p70 = scmp.ne.s32.totalorder %s53, %s69
      %p71 = scmp.eq.s32.totalorder %s19, 0
      %p72 = por %p70, %p71
      %p73 = scmp.le.s32.totalorder 1, %s13
      %p74 = scmp.lt.s32.totalorder %s13, 3
      %p75 = pnand %p73, %p74
      %p76 = pneg %p75
      // Predicated region
      $region9: #{tpu_custom_call.1} parent=5 // pred_check
        _
      $region10: #{tpu_custom_call.1} parent=5 // pred_check_branch
        %78 = sbr.rel (%p75) target = $region12
      $region11: #{tpu_custom_call.1} parent=5 // pred_region
        %s79 = ssub.s32 %s13, 1
      $region12: #{tpu_custom_call.1} parent=5 // pred_fallthru
        _
      %p80 = scmp.lt.s32.totalorder %s13, 2
      // Predicated region
      $region13: #{tpu_custom_call.1} parent=5 // pred_check
        %p81 = pneg %p80
      $region14: #{tpu_custom_call.1} parent=5 // pred_check_branch
        %83 = sbr.rel (%p81) target = $region16
      $region15: #{tpu_custom_call.1} parent=5 // pred_region
        // Predicated region
        $region17: #{tpu_custom_call.1} parent=15 // pred_check
          %p84 = pneg %p33
        $region18: #{tpu_custom_call.1} parent=15 // pred_check_branch
          %86 = sbr.rel (%p84) target = $region20
        $region19: #{tpu_custom_call.1} parent=15 // pred_region
          %s87 = sand.u32 %s23, 1
          %s88 = scalar_lea.sflag [#allocation3], %s87
          %s89 = sand.u32 %s23, 1
          %s90 = smul.addr %s89, 8
          %s91 = scalar_lea.vmem [#allocation2], %s90
          %93 = vsyncadd %s88, 0
          %s94 = smul.addr %s13, 8
          %s95 = scalar_lea.hbm %s0, %s94
          %s97 = sshll.u32 %s95, 4
          %s98 = int_to_ptr.hbm [resolvable:$true] %s97
          %s99 = sshll.u32 %s91, 4
          %s100 = int_to_ptr.vmem [resolvable:$true] %s99
          %102 = dma.hbm_to_vmem [thread:$0]  %s98, 128, %s100, %s88
        $region20: #{tpu_custom_call.1} parent=15 // pred_fallthru
          _
      $region16: #{tpu_custom_call.1} parent=5 // pred_fallthru
        _
      %p103 = scmp.le.s32.totalorder 1, %s13
      %p104 = scmp.lt.s32.totalorder %s13, 3
      %p105 = pnand %p103, %p104
      %p106 = pneg %p105
      // Predicated region
      $region21: #{tpu_custom_call.1} parent=5 // pred_check
        _
      $region22: #{tpu_custom_call.1} parent=5 // pred_check_branch
        %108 = sbr.rel (%p105) target = $region24
      $region23: #{tpu_custom_call.1} parent=5 // pred_region
        %s109 = ssub.s32 %s13, 1
        %s110 = sand.u32 %s26, 1
        %s111 = scalar_lea.sflag [#allocation3], %s110
        %s112 = sand.u32 %s26, 1
        %s113 = smul.addr %s112, 8
        %s114 = scalar_lea.vmem [#allocation2], %s113
        // Predicated region
        $region25: #{tpu_custom_call.1} parent=23 // pred_check
          %p115 = pneg %p39
        $region26: #{tpu_custom_call.1} parent=23 // pred_check_branch
          %117 = sbr.rel (%p115) target = $region28
        $region27: #{tpu_custom_call.1} parent=23 // pred_region
          %119 = dma.done %s111, 128
        $region28: #{tpu_custom_call.1} parent=23 // pred_fallthru
          _
        %s120 = sand.u32 %s26, 1
        %s121 = scalar_lea.sflag [#allocation3], %s120
        %s122 = sand.u32 %s26, 1
        %s123 = smul.addr %s122, 8
        %s124 = scalar_lea.vmem [#allocation2], %s123
        %p125 = pneg %p39
        %p126 = pneg %p36
        %p127 = pneg %p65
        %p128 = pneg %p62
        %s129 = sand.u32 %s52, 1
        %s130 = scalar_lea.sflag [#allocation4], %s129
        %s131 = sand.u32 %s52, 1
        %s132 = smul.addr %s131, 2
        %s133 = scalar_lea.vmem [#allocation5], %s132
        %v134 = vld [vmem:[%s114] sm:$0xff]
        %v136 = vrot.slane %v134, 7
        %v138 = vsub.f32 %v134, %v136
        %v139 = vand.u32 2147483647, %v138
        %v141 = vrot.slane %v139, 6
        %v143 = vadd.f32 %v139, %v141
        %v144 = vrot.slane %v134, 6
        %v145 = vsub.f32 %v144, %v134
        %v146 = vand.u32 2147483647, %v145
        %v147 = vrot.slane %v146, 4
        %v148 = vadd.f32 %v146, %v147
        %v149 = vrot.slane %v148, 2
        %v150 = vadd.f32 %v148, %v149
        %v151 = vrot.slane %v150, 1
        %v152 = vadd.f32 %v150, %v151
        %v153 = vrot.slane %v134, 6
        %v155 = vsub.f32 %v134, %v153
        %v156 = vand.u32 2147483647, %v155
        %v158 = vrot.slane %v156, 1
        %v160 = vadd.f32 %v156, %v158
        %v161 = vsub.f32 %v152, %v160
        %v163 = vrot.slane %v161, 7
        %v165 = vadd.f32 %v143, %v163
        %v166 = vperm.slane %v134, 0
        %v167 = vsub.f32 %v134, %v166
        %v168 = vrot.slane %v167, 4
        %v169 = vadd.f32 %v167, %v168
        %v170 = vrot.slane %v169, 2
        %v171 = vadd.f32 %v169, %v170
        %v172 = vrot.slane %v171, 1
        %v173 = vadd.f32 %v171, %v172
        %v174 = vmul.f32 %v167, %v167
        %v175 = vrot.slane %v174, 4
        %v176 = vadd.f32 %v174, %v175
        %v177 = vrot.slane %v176, 2
        %v178 = vadd.f32 %v176, %v177
        %v179 = vrot.slane %v178, 1
        %v180 = vadd.f32 %v178, %v179
        %v181 = vmul.f32 %v173, %v173
        %v182 = vmul.f32 %v181, 0.125
        %v183 = vsub.f32 %v180, %v182
        %v184 = vmul.f32 %v183, 0.14285715
        %v185 = vadd.f32 %v165, 0.0
        %v186 = vmul.f32 %v185, 0.5
        %187 = vst [vmem:[%s133 - $0x1] sm:$0x2] %v186
        %v188 = vadd.f32 %v184, 0.0
        %189 = vst [vmem:[%s133 + $0x1] sm:$0x1] %v188
        %s190 = sand.u32 %s52, 1
        %s191 = scalar_lea.sflag [#allocation4], %s190
        %s192 = sand.u32 %s52, 1
        %s193 = smul.addr %s192, 2
        %s194 = scalar_lea.vmem [#allocation5], %s193
        // Predicated region
        $region29: #{tpu_custom_call.1} parent=23 // pred_check
          %p195 = pneg %p62
        $region30: #{tpu_custom_call.1} parent=23 // pred_check_branch
          %197 = sbr.rel (%p195) target = $region32
        $region31: #{tpu_custom_call.1} parent=23 // pred_region
          %199 = vsyncadd %s191, 0
          %s200 = smul.addr %s18, 2
          %s201 = scalar_lea.hbm %s1, %s200
          %s203 = sshll.u32 %s194, 4
          %s204 = int_to_ptr.vmem [resolvable:$true] %s203
          %s205 = sshll.u32 %s201, 4
          %s206 = int_to_ptr.hbm [resolvable:$true] %s205
          %208 = dma.vmem_to_hbm [thread:$0]  %s204, 32, %s206, %s191
        $region32: #{tpu_custom_call.1} parent=23 // pred_fallthru
          _
      $region24: #{tpu_custom_call.1} parent=5 // pred_fallthru
        _
      %p209 = scmp.le.s32.totalorder 2, %s13
      // Predicated region
      $region33: #{tpu_custom_call.1} parent=5 // pred_check
        %p210 = pneg %p209
      $region34: #{tpu_custom_call.1} parent=5 // pred_check_branch
        %212 = sbr.rel (%p210) target = $region36
      $region35: #{tpu_custom_call.1} parent=5 // pred_region
        %s213 = ssub.s32 %s13, 2
        // Predicated region
        $region37: #{tpu_custom_call.1} parent=35 // pred_check
          %p214 = pneg %p68
        $region38: #{tpu_custom_call.1} parent=35 // pred_check_branch
          %216 = sbr.rel (%p214) target = $region40
        $region39: #{tpu_custom_call.1} parent=35 // pred_region
          %s217 = sand.u32 %s53, 1
          %s218 = scalar_lea.sflag [#allocation4], %s217
          %s219 = sand.u32 %s53, 1
          %s220 = smul.addr %s219, 2
          %s221 = scalar_lea.vmem [#allocation5], %s220
          %223 = dma.done %s218, 32
        $region40: #{tpu_custom_call.1} parent=35 // pred_fallthru
          _
      $region36: #{tpu_custom_call.1} parent=5 // pred_fallthru
        _
    $region6: #{tpu_custom_call.1} parent=1 // loop_footer
      %s17 = sadd.s32 1, %s13
    $region7: #{tpu_custom_call.1} parent=1 // loop_footer_branch
      %12 = sbr.rel target = $region3
    $region8: #{tpu_custom_call.1} parent=1 // loop_exit
      _
    %224 = vsyncpa [#allocation3], 1
    %s225 = scalar_lea.sflag [#allocation3], 1
    %226 = vsyncpa %s225, 1
    %227 = vsyncpa [#allocation4], 1
    %s228 = scalar_lea.sflag [#allocation4], 1
    %229 = vsyncpa %s228, 1

</llo_original>
